<compile_context>
chip_gen: v7x
topology: tpu7x:2x2x1
jax: 0.10.0
libtpu: 0.0.40
codegen_flags: <defaults>
</compile_context>

<pallas_src>
import functools

import jax
import jax.numpy as jnp
from jax.experimental import pallas as pl
from jax.experimental.pallas import tpu as pltpu

_LANE_CHOICES = (512, 256, 128)   # lane-dense widths; first one dividing numel wins
_MAX_FOLD = 32                    # in-block fold factor (acc rows = block_rows / fold)
_OUT_SHAPE = (8, 128)             # lane/sublane-aligned scalar output slab


def _tpu_vmem_capacity_bytes() -> int:
    """Physical VMEM of the local chip; conservative default if unqueryable."""
    try:
        cap = int(getattr(pltpu.get_tpu_info(), "vmem_capacity_bytes", 0) or 0)
        if cap > 0:
            return cap
    except Exception:
        pass
    return 64 * 1024 * 1024       # v7x per-TensorCore figure (smallest current chip)


def _ssd_block_kernel(x_ref, y_ref, out_ref, acc_ref, *, fold):
    """Accumulate sum((x - y)^2) over a sequential 1-D grid of row blocks.

    Every block the grid touches is fully in-bounds (the wrapper only covers the
    block-aligned row prefix), so there is no masking on the hot path.  The
    block is consumed as `fold` tile-aligned static sub-slices so that live
    temporaries stay small; the per-block partial sum (pure-VPU work, hidden
    under the input DMA) is accumulated into a small f32 scratch and reduced
    cross-lane exactly once per kernel call.
    """
    i = pl.program_id(0)
    h = x_ref.shape[0] // fold     # static; sub-slices are packed-tile aligned

    partial = None
    for t in range(fold):
        xs = x_ref[t * h:(t + 1) * h, :].astype(jnp.float32)
        ys = y_ref[t * h:(t + 1) * h, :].astype(jnp.float32)
        d = xs - ys
        sq = d * d
        partial = sq if partial is None else partial + sq

    @pl.when(i == 0)
    def _():                       # first step writes directly (no zero-fill pass)
        acc_ref[...] = partial

    @pl.when(i > 0)
    def _():
        acc_ref[...] += partial

    @pl.when(i == pl.num_programs(0) - 1)
    def _():                       # single cross-lane reduce per kernel call
        out_ref[...] = jnp.broadcast_to(jnp.sum(acc_ref[...]), out_ref.shape)


def cnn_loss(x, y, alpha: float = 0.12, beta: float = 0.1, *, block_bytes=None):
    """Pallas implementation of CNNLoss.forward == mean(|x - y|**2).

    alpha / beta only scale loss terms that the reference forward computes and
    then discards (it returns the plain L2 term); accepted for signature
    parity and unused.
    TODO(synk): FocalFrequencyLoss / DiscreteWaveletLoss are intentionally not
    reproduced -- CNNLoss.forward returns only L2Loss()(x, y).
    """
    assert x.shape == y.shape, "x and y must have the same shape"
    n = x.size
    assert n > 0
    xf = x.reshape(-1)
    yf = y.reshape(-1)

    lanes = next((lw for lw in _LANE_CHOICES if n % lw == 0), None)
    if lanes is None:
        # numel not a multiple of 128: no zero-copy lane-dense 2-D view exists.
        # This memory-bound reduction is handled by one fused XLA reduction
        # (each input read exactly once) instead of padding/copying the inputs
        # just to route them through Pallas.
        d = xf.astype(jnp.float32) - yf.astype(jnp.float32)
        return (jnp.sum(d * d) / jnp.float32(n)).astype(jnp.float32)

    rows = n // lanes
    x2 = xf.reshape(rows, lanes)       # bitcast reshape of contiguous data: no copy
    y2 = yf.reshape(rows, lanes)
    itemsize = jnp.dtype(x2.dtype).itemsize

    # --- chip-aware block / VMEM sizing (all static Python) --------------------
    big_vmem = _tpu_vmem_capacity_bytes() >= 96 * 1024 * 1024   # v5e/v6e: 128 MiB
    if block_bytes is None:
        block_bytes = (16 if big_vmem else 8) * 1024 * 1024     # per input per step
    vmem_limit = (96 if big_vmem else 48) * 1024 * 1024

    sub_mult = max(8, 32 // itemsize)      # packed sublane count: 8 f32, 16 bf16, 32 i8
    row_align = sub_mult * _MAX_FOLD

    target_rows = max(sub_mult, block_bytes // (itemsize * lanes))
    if rows <= target_rows:
        block_rows = rows                              # single full-extent block
    else:
        block_rows = max(row_align, (target_rows // row_align) * row_align)
        block_rows = min(block_rows, rows)
    steps = max(1, rows // block_rows)
    rows_main = steps * block_rows                     # block-aligned row prefix

    # Fold factor: sub-slice heights must stay packed-tile aligned (free slices).
    fold = next((f for f in (_MAX_FOLD, 16, 8, 4, 2)
                 if block_rows % (sub_mult * f) == 0), 1)
    acc_rows = block_rows // fold

    grid_spec = pl.GridSpec(
        grid=(steps,),
        in_specs=[pl.BlockSpec((block_rows, lanes), lambda i: (i, 0)),
                  pl.BlockSpec((block_rows, lanes), lambda i: (i, 0))],
        out_specs=pl.BlockSpec(_OUT_SHAPE, lambda i: (0, 0)),
        scratch_shapes=[pltpu.VMEM((acc_rows, lanes), jnp.float32)],
    )

    out = pl.pallas_call(
        functools.partial(_ssd_block_kernel, fold=fold),
        out_shape=jax.ShapeDtypeStruct(_OUT_SHAPE, jnp.float32),
        grid_spec=grid_spec,
        compiler_params=pltpu.CompilerParams(
            dimension_semantics=("arbitrary",),
            vmem_limit_bytes=vmem_limit,
        ),
        cost_estimate=pl.CostEstimate(
            flops=3 * rows_main * lanes,
            transcendentals=0,
            bytes_accessed=2 * rows_main * lanes * itemsize
                           + _OUT_SHAPE[0] * _OUT_SHAPE[1] * 4,
        ),
    )(x2, y2)

    ssd = out[0, 0]
    if rows_main < rows:
        # Row remainder (< block_rows rows): fused XLA slice + reduce reading the
        # original buffers directly -- no padded copies, no in-kernel masking.
        dt = (x2[rows_main:, :].astype(jnp.float32)
              - y2[rows_main:, :].astype(jnp.float32))
        ssd = ssd + jnp.sum(dt * dt)
    return (ssd / jnp.float32(n)).astype(jnp.float32)


if __name__ == "__main__":
    def ref_loss(a, b):
        return jnp.mean(jnp.abs(a.astype(jnp.float32) - b.astype(jnp.float32)) ** 2)

    key = jax.random.PRNGKey(0)
    cases = [
        ((2, 4, 16, 16), jnp.float32, None),          # tiny: single full-extent block
        ((2, 3, 512, 768), jnp.float32, None),        # medium: chip-default block sizing
        ((2, 3, 512, 768), jnp.bfloat16, None),       # bf16 inputs, f32 accumulation
        ((2, 3, 200, 256), jnp.float32, 256 * 1024),  # forced small blocks: multi-step + row tail
        ((2, 3, 17, 19), jnp.float32, None),          # numel % 128 != 0: fused-XLA fallback
    ]
    for shp, dt, bb in cases:
        key, kx, ky = jax.random.split(key, 3)
        x = jax.random.normal(kx, shp, dtype=jnp.float32).astype(dt)
        y = jax.random.normal(ky, shp, dtype=jnp.float32).astype(dt)
        f = jax.jit(functools.partial(cnn_loss, block_bytes=bb))
        out = jax.block_until_ready(f(x, y))
        ref = jax.block_until_ready(ref_loss(x, y))
        assert jnp.allclose(out, ref, rtol=1e-4, atol=1e-6), \
            (shp, str(dt), float(out), float(ref))
    print("KERNEL_OK")
</pallas_src>

<mosaic_0001>
module attributes {stable_mosaic.version = 11 : i64} {
  func.func @_ssd_block_kernel(%arg0: i32, %arg1: memref<4x512xf32, #tpu.memory_space<vmem>>, %arg2: memref<4x512xf32, #tpu.memory_space<vmem>>, %arg3: memref<8x128xf32, #tpu.memory_space<vmem>>, %arg4: memref<4x512xf32, #tpu.memory_space<vmem>>) attributes {dimension_semantics = [#tpu.dimension_semantics<arbitrary>], iteration_bounds = array<i64: 1>, scalar_prefetch = 0 : i64, scratch_operands = 1 : i64, tpu.core_type = #tpu.core_type<tc>, window_params = [{transform_indices = @transform_0, window_bounds = array<i64: 4, 512>}, {transform_indices = @transform_1, window_bounds = array<i64: 4, 512>}, {pipeline_mode = #tpu.pipeline_mode<synchronous>, transform_indices = @transform_2, window_bounds = array<i64: 8, 128>}]} {
    %c0 = arith.constant 0 : index
    %c0_0 = arith.constant 0 : index
    %0 = vector.load %arg1[%c0, %c0_0] : memref<4x512xf32, #tpu.memory_space<vmem>>, vector<4x512xf32>
    %c0_1 = arith.constant 0 : index
    %c0_2 = arith.constant 0 : index
    %1 = vector.load %arg2[%c0_1, %c0_2] : memref<4x512xf32, #tpu.memory_space<vmem>>, vector<4x512xf32>
    %2 = arith.subf %0, %1 : vector<4x512xf32>
    %3 = arith.mulf %2, %2 : vector<4x512xf32>
    %c0_i32 = arith.constant 0 : i32
    %4 = arith.cmpi eq, %arg0, %c0_i32 : i32
    %5 = arith.extui %4 : i1 to i32
    %c0_i32_3 = arith.constant 0 : i32
    %6 = arith.cmpi ne, %5, %c0_i32_3 : i32
    scf.if %6 {
      %c0_8 = arith.constant 0 : index
      %c0_9 = arith.constant 0 : index
      %13 = vector.load %arg4[%c0_8, %c0_9] : memref<4x512xf32, #tpu.memory_space<vmem>>, vector<4x512xf32>
      tpu.vector_store %arg4[%c0_8, %c0_9], %3 {strides = array<i32>} : memref<4x512xf32, #tpu.memory_space<vmem>>, vector<4x512xf32>,
    } else {
    }
    %c0_i32_4 = arith.constant 0 : i32
    %7 = arith.cmpi sgt, %arg0, %c0_i32_4 : i32
    %8 = arith.extui %7 : i1 to i32
    %c0_i32_5 = arith.constant 0 : i32
    %9 = arith.cmpi ne, %8, %c0_i32_5 : i32
    scf.if %9 {
      %c0_8 = arith.constant 0 : index
      %c0_9 = arith.constant 0 : index
      %13 = vector.load %arg4[%c0_8, %c0_9] : memref<4x512xf32, #tpu.memory_space<vmem>>, vector<4x512xf32>
      %14 = arith.addf %13, %3 : vector<4x512xf32>
      %c0_10 = arith.constant 0 : index
      %c0_11 = arith.constant 0 : index
      %15 = vector.load %arg4[%c0_10, %c0_11] : memref<4x512xf32, #tpu.memory_space<vmem>>, vector<4x512xf32>
      tpu.vector_store %arg4[%c0_10, %c0_11], %14 {strides = array<i32>} : memref<4x512xf32, #tpu.memory_space<vmem>>, vector<4x512xf32>,
    } else {
    }
    %c0_i32_6 = arith.constant 0 : i32
    %10 = arith.cmpi eq, %arg0, %c0_i32_6 : i32
    %11 = arith.extui %10 : i1 to i32
    %c0_i32_7 = arith.constant 0 : i32
    %12 = arith.cmpi ne, %11, %c0_i32_7 : i32
    scf.if %12 {
      %c0_8 = arith.constant 0 : index
      %c0_9 = arith.constant 0 : index
      %13 = vector.load %arg4[%c0_8, %c0_9] : memref<4x512xf32, #tpu.memory_space<vmem>>, vector<4x512xf32>
      %14 = vector.shape_cast %13 : vector<4x512xf32> to vector<1x4x512xf32>
      %cst = arith.constant dense<0.000000e+00> : vector<1xf32>
      %15 = vector.multi_reduction <add>, %14, %cst [1, 2] : vector<1x4x512xf32> to vector<1xf32>
      %16 = vector.shape_cast %15 : vector<1xf32> to vector<1x1x1xf32>
      %17 = vector.extract %16[0, 0, 0] : f32 from vector<1x1x1xf32>
      %18 = vector.broadcast %17 : f32 to vector<8x128xf32>
      %c0_10 = arith.constant 0 : index
      %c0_11 = arith.constant 0 : index
      %19 = vector.load %arg3[%c0_10, %c0_11] : memref<8x128xf32, #tpu.memory_space<vmem>>, vector<8x128xf32>
      tpu.vector_store %arg3[%c0_10, %c0_11], %18 {strides = array<i32>} : memref<8x128xf32, #tpu.memory_space<vmem>>, vector<8x128xf32>,
    } else {
    }
    return
  }
  func.func @transform_0(%arg0: i32) -> (i32, i32) {
    %c0_i32 = arith.constant 0 : i32
    %c0_i32_0 = arith.constant 0 : i32
    return %arg0, %c0_i32 : i32, i32
  }
  func.func @transform_1(%arg0: i32) -> (i32, i32) {
    %c0_i32 = arith.constant 0 : i32
    %c0_i32_0 = arith.constant 0 : i32
    return %arg0, %c0_i32 : i32, i32
  }
  func.func @transform_2(%arg0: i32) -> (i32, i32) {
    %c0_i32 = arith.constant 0 : i32
    %c0_i32_0 = arith.constant 0 : i32
    %c0_i32_1 = arith.constant 0 : i32
    return %c0_i32, %c0_i32_0 : i32, i32
  }
}

</mosaic_0001>

<llo_original>
// kernel: cnn_loss.1
$region0: #{cnn_loss.1}
  #allocation0 [shape = 'u32[]', space=smem, size = 0x4, offset = 0x4, fixed_abs, tag = 'smem constant byte address 0x4 - core index']
  #allocation1 [shape = 'u32[144,128]{1,0:T(1,128)}', space=vmem, size = 0x12000, scoped, tag = 'internal scratch']
  #allocation2 [shape = 'f32[4,512]{1,0:T(4,128)}', space=vmem, size = 0x2000, scoped, tag = 'scratch operand']
  %s0 = inlined_call_operand.vmem [shape: f32[4,512], index: 0, kind: input, shape index: {}]
  %s1 = inlined_call_operand.vmem [shape: f32[4,512], index: 1, kind: input, shape index: {}]
  %s2 = inlined_call_operand.vmem [shape: f32[8,128], index: 2, kind: output, shape index: {}]
  %s3 = sld [smem:[#allocation0]]
  $region30: #{cnn_loss.1} parent=0
    _
  %s5 = ssub.s32 1, %s3
  %s6 = scalar_select 0, %s5, %s3
  // Predicated region
  $region2: #{cnn_loss.1} parent=0 // pred_check
    _
  $region3: #{cnn_loss.1} parent=0 // pred_check_branch
    %8 = sbr.rel (0) target = $region5
  $region4: #{cnn_loss.1} parent=0 // pred_region
    _
  $region5: #{cnn_loss.1} parent=0 // pred_fallthru
    _
  // Predicated region
  $region6: #{cnn_loss.1} parent=0 // pred_check
    _
  $region7: #{cnn_loss.1} parent=0 // pred_check_branch
    %10 = sbr.rel (0) target = $region9
  $region8: #{cnn_loss.1} parent=0 // pred_region
    _
  $region9: #{cnn_loss.1} parent=0 // pred_fallthru
    _
  %v11 = vld [vmem:[%s0] sm:$0xff]
  %v12 = vld [vmem:[%s0 + $0x8] sm:$0xff]
  %v13 = vld [vmem:[%s1] sm:$0xff]
  %v14 = vld [vmem:[%s1 + $0x8] sm:$0xff]
  %v15 = vsub.f32 %v11, %v13
  %v16 = vsub.f32 %v12, %v14
  %v17 = vmul.f32 %v15, %v15
  %v18 = vmul.f32 %v16, %v16
  %p19 = scmp.eq.s32.totalorder 0, 0
  // Predicated region
  $region10: #{cnn_loss.1} parent=0 // pred_check
    %p20 = pneg %p19
  $region11: #{cnn_loss.1} parent=0 // pred_check_branch
    %22 = sbr.rel (%p20) target = $region13
  $region12: #{cnn_loss.1} parent=0 // pred_region
    %23 = vst [vmem:[#allocation2] sm:$0xff] %v17
    %24 = vst [vmem:[#allocation2 + $0x8] sm:$0xff] %v18
  $region13: #{cnn_loss.1} parent=0 // pred_fallthru
    _
  %p25 = scmp.gt.s32.totalorder 0, 0
  // Predicated region
  $region14: #{cnn_loss.1} parent=0 // pred_check
    %p26 = pneg %p25
  $region15: #{cnn_loss.1} parent=0 // pred_check_branch
    %28 = sbr.rel (%p26) target = $region17
  $region16: #{cnn_loss.1} parent=0 // pred_region
    %v29 = vld [vmem:[#allocation2] sm:$0xff]
    %v30 = vld [vmem:[#allocation2 + $0x8] sm:$0xff]
    %v31 = vadd.f32 %v29, %v17
    %v32 = vadd.f32 %v30, %v18
    %33 = vst [vmem:[#allocation2] sm:$0xff] %v31
    %34 = vst [vmem:[#allocation2 + $0x8] sm:$0xff] %v32
  $region17: #{cnn_loss.1} parent=0 // pred_fallthru
    _
  // Predicated region
  $region18: #{cnn_loss.1} parent=0 // pred_check
    %p35 = pneg %p19
  $region19: #{cnn_loss.1} parent=0 // pred_check_branch
    %37 = sbr.rel (%p35) target = $region21
  $region20: #{cnn_loss.1} parent=0 // pred_region
    %v38 = vld [vmem:[#allocation2] sm:$0xff]
    %v39 = vld [vmem:[#allocation2 + $0x8] sm:$0xff]
    %v42 = vcombine.high %v38, %v38
    %v43 = vcombine.high %v39, %v39
    %vm46 = vcmask 1043456
    %v47 = vsel %vm46, %v38, 0.0
    %v48 = vsel %vm46, %v42, 0.0
    %v49 = vadd.f32 %v47, %v48
    %v50 = vsel %vm46, %v39, 0.0
    %v51 = vadd.f32 %v49, %v50
    %v52 = vsel %vm46, %v43, 0.0
    %v53 = vadd.f32 %v51, %v52
    %54 = vadd.xlane.f32.xlu0 %v53
    %v55 = vpop.xlane.xlu0 %54
    %v56 = vrot.slane %v55, 4
    %v57 = vadd.f32 %v55, %v56
    %v58 = vrot.slane %v57, 2
    %v59 = vadd.f32 %v57, %v58
    %v60 = vrot.slane %v59, 1
    %v61 = vadd.f32 %v59, %v60
    %s62 = vtos %v61
    %v63 = vstv %s62
    %64 = vst [vmem:[%s2] sm:$0xff] %v63
  $region21: #{cnn_loss.1} parent=0 // pred_fallthru
    _
  // Predicated region
  $region22: #{cnn_loss.1} parent=0 // pred_check
    _
  $region23: #{cnn_loss.1} parent=0 // pred_check_branch
    %66 = sbr.rel (0) target = $region25
  $region24: #{cnn_loss.1} parent=0 // pred_region
    _
  $region25: #{cnn_loss.1} parent=0 // pred_fallthru
    _
  // Predicated region
  $region26: #{cnn_loss.1} parent=0 // pred_check
    _
  $region27: #{cnn_loss.1} parent=0 // pred_check_branch
    %68 = sbr.rel (0) target = $region29
  $region28: #{cnn_loss.1} parent=0 // pred_region
    _
  $region29: #{cnn_loss.1} parent=0 // pred_fallthru
    _

</llo_original>
